<compile_context>
chip_gen: v7x
topology: tpu7x:2x2x1
jax: 0.10.0
libtpu: 0.0.40
codegen_flags: <defaults>
</compile_context>

<pallas_src>
import jax
import jax.numpy as jnp
from jax import lax
from jax.experimental import pallas as pl
from jax.experimental.pallas import tpu as pltpu

HIDDEN = 64   # matches the module default hidden_size=64
SEQ = 8


def _round_up(n, m):
    return ((n + m - 1) // m) * m


def gru_linear_kernel(x_ref,       # VMEM (TB, seq) f32 : TB sequences, one per sublane row
                      w_hh_ref,    # VMEM (H, 3H)  bf16 : fused [W_hr|W_hz|W_hn]^T, used as h @ W
                      params_ref,  # VMEM (8, 3H)  f32  : packed small params (see pack_params)
                      out_ref):    # VMEM (TB, 1)  f32  : Linear output per sequence
    H = w_hh_ref.shape[0]
    seq = x_ref.shape[1]

    # Hoist every parameter load / static slice out of the recurrence (static ref slices are free).
    w_hh = w_hh_ref[...]                 # (H, 3H) bf16 — single MXU weight tile per step
    w_ih = params_ref[0:1, :]            # (1, 3H)  [w_ir | w_iz | w_in]   (input_size = 1)
    b_gi = params_ref[1:2, :]            # (1, 3H)  [b_ir+b_hr | b_iz+b_hz | b_in]
    b_hn = params_ref[2:3, 0:H]          # (1, H)   b_hn (stays inside r * (W_hn h + b_hn))
    w_out = params_ref[3:4, 0:H]         # (1, H)   Linear weight row
    b_out = params_ref[4:5, 0:1]         # (1, 1)   Linear bias

    x = x_ref[...]                       # (TB, seq) f32
    TB = x.shape[0]

    # PyTorch GRU cell (gate order r, z, n):
    #   r = sigmoid(W_ir x + b_ir + W_hr h + b_hr)
    #   z = sigmoid(W_iz x + b_iz + W_hz h + b_hz)
    #   n = tanh   (W_in x + b_in + r * (W_hn h + b_hn))
    #   h = (1 - z) * n + z * h
    h = jnp.zeros((TB, H), jnp.float32)
    for t in range(seq):                 # seq is static -> full unroll
        # x-dependent gate term: no dependence on h, so it sits off the serial critical path.
        g_t = x[:, t:t + 1] * w_ih + b_gi                                   # (TB, 3H) f32, VPU
        # One bf16 MXU pass per step (192 output lanes = one 256-wide column tile on v6e/v7x).
        gh = jnp.dot(h.astype(jnp.bfloat16), w_hh,
                     preferred_element_type=jnp.float32)                    # (TB, 3H) f32
        r = jax.nn.sigmoid(g_t[:, 0:H] + gh[:, 0:H])
        # z (lanes 64:128, unaligned slice) is only consumed at the final blend; its lane
        # relayout is expected to hide under the tanh (bundle-verify per review).
        z = jax.nn.sigmoid(g_t[:, H:2 * H] + gh[:, H:2 * H])
        n = jnp.tanh(g_t[:, 2 * H:3 * H] + r * (gh[:, 2 * H:3 * H] + b_hn))
        h = (1.0 - z) * n + z * h

    # Output Linear as VPU multiply + lane reduce (avoids an MXU push for a 1-lane result).
    out_ref[...] = jnp.sum(h * w_out, axis=-1, keepdims=True) + b_out


def init_params(key, hidden=HIDDEN):
    """Deterministic init mimicking PyTorch's uniform(-1/sqrt(H), 1/sqrt(H))."""
    ks = jax.random.split(key, 6)
    bound = 1.0 / jnp.sqrt(jnp.float32(hidden))
    u = lambda k, shp: jax.random.uniform(k, shp, jnp.float32, -bound, bound)
    return {
        "weight_ih": u(ks[0], (3 * hidden, 1)),        # PyTorch GRU weight_ih_l0
        "weight_hh": u(ks[1], (3 * hidden, hidden)),   # PyTorch GRU weight_hh_l0
        "bias_ih":   u(ks[2], (3 * hidden,)),
        "bias_hh":   u(ks[3], (3 * hidden,)),
        "lin_w":     u(ks[4], (1, hidden)),            # nn.Linear(hidden, 1).weight
        "lin_b":     u(ks[5], (1,)),
    }


def pack_params(params, hidden=HIDDEN):
    """One-time re-pack of PyTorch-layout weights into kernel-friendly fused layouts.

    Returns:
      w_hh  : (H, 3H) bf16 — transposed fused hidden->gate weights (h @ w_hh == (W_hh_pt @ h)^T),
              pre-cast so the kernel gets a single-pass bf16 MXU operand and half the DMA bytes.
      small : (8, 3H) f32  — all five tiny params in one lane-padded array (one DMA):
              row 0: [w_ir | w_iz | w_in]
              row 1: [b_ir+b_hr | b_iz+b_hz | b_in]   (b_hr/b_hz folded; b_hn cannot be)
              row 2: [b_hn | 0 ...]
              row 3: [lin_w | 0 ...]
              row 4: [lin_b, 0 ...]
              rows 5-7: zero padding (sublane alignment)
    """
    H = hidden
    b_ih, b_hh = params["bias_ih"], params["bias_hh"]
    row0 = params["weight_ih"][:, 0]                                     # (3H,)
    row1 = jnp.concatenate([b_ih[0:H] + b_hh[0:H],
                            b_ih[H:2 * H] + b_hh[H:2 * H],
                            b_ih[2 * H:3 * H]])                          # (3H,)
    row2 = jnp.zeros((3 * H,), jnp.float32).at[0:H].set(b_hh[2 * H:3 * H])
    row3 = jnp.zeros((3 * H,), jnp.float32).at[0:H].set(params["lin_w"][0])
    row4 = jnp.zeros((3 * H,), jnp.float32).at[0].set(params["lin_b"][0])
    pad = jnp.zeros((3, 3 * H), jnp.float32)
    small = jnp.concatenate(
        [row0[None], row1[None], row2[None], row3[None], row4[None], pad], axis=0)
    w_hh = params["weight_hh"].T.astype(jnp.bfloat16)                    # (H, 3H)
    return {"w_hh": w_hh, "small": small}


def simple_rnn_forward_batched(xb, packed, *, block_b=128):
    """Batched forward: xb (B, seq) f32 -> (B,) f32, one independent GRU+Linear per row.

    Batch rows feed the MXU LHS; batch blocks are a "parallel" grid axis (both v7x TCs).
    """
    B, seq = xb.shape
    H = packed["w_hh"].shape[0]
    TB = min(block_b, _round_up(B, 8))          # batch tile: multiple of 8 sublanes, <= block_b
    B_pad = _round_up(B, TB)
    if B_pad != B:
        xb = jnp.concatenate([xb, jnp.zeros((B_pad - B, seq), xb.dtype)], axis=0)

    out = pl.pallas_call(
        gru_linear_kernel,
        out_shape=jax.ShapeDtypeStruct((B_pad, 1), jnp.float32),
        grid=(B_pad // TB,),
        in_specs=[
            pl.BlockSpec((TB, seq), lambda i: (i, 0)),       # x: blocked over batch
            pl.BlockSpec((H, 3 * H), lambda i: (0, 0)),      # w_hh: resident across grid
            pl.BlockSpec((8, 3 * H), lambda i: (0, 0)),      # packed small params: resident
        ],
        out_specs=pl.BlockSpec((TB, 1), lambda i: (i, 0)),
        compiler_params=pltpu.CompilerParams(
            dimension_semantics=("parallel",)),              # v7x: shard batch blocks over 2 TCs
    )(xb.astype(jnp.float32), packed["w_hh"], packed["small"])
    return out[:B, 0]


def simple_rnn_forward(x, packed):
    """Module-semantics forward: x is a 1-D sequence -> scalar (matches PyTorch .squeeze())."""
    if x.size == 0:
        # x.numel() == 0 branch: h = zeros -> output is just the Linear bias.
        return packed["small"][4, 0]
    return simple_rnn_forward_batched(x.reshape(1, -1), packed)[0]


def reference_forward(x, params, hidden=HIDDEN, matmul_dtype=jnp.float32):
    """Pure-JAX reference replicating torch.nn.GRU + Linear semantics.

    matmul_dtype=bfloat16 mimics the kernel's bf16 MXU operand cast (f32 accumulate).
    """
    H = hidden
    w_ih = params["weight_ih"]          # (3H, 1)
    w_hh_t = params["weight_hh"].T.astype(matmul_dtype)   # (H, 3H), same layout as the kernel
    b_ih, b_hh = params["bias_ih"], params["bias_hh"]

    def cell(h, x_t):
        gi = w_ih[:, 0] * x_t + b_ih                                            # (3H,)
        gh = jnp.dot(h.astype(matmul_dtype), w_hh_t,
                     preferred_element_type=jnp.float32) + b_hh                 # (3H,)
        r = jax.nn.sigmoid(gi[:H] + gh[:H])
        z = jax.nn.sigmoid(gi[H:2 * H] + gh[H:2 * H])
        n = jnp.tanh(gi[2 * H:] + r * gh[2 * H:])
        return (1.0 - z) * n + z * h, None

    h0 = jnp.zeros((H,), jnp.float32)
    h, _ = lax.scan(cell, h0, x.astype(jnp.float32))
    return (params["lin_w"] @ h + params["lin_b"])[0]


if __name__ == "__main__":
    key = jax.random.PRNGKey(0)
    k_param, k_x = jax.random.split(key)
    params = init_params(k_param, HIDDEN)
    packed = pack_params(params, HIDDEN)                 # one-time pack, outside the hot path

    # --- single sequence: exactly the PyTorch module's forward (1-D x -> scalar) ------------
    x = jax.random.normal(k_x, (SEQ,), jnp.float32)
    y = jax.block_until_ready(simple_rnn_forward(x, packed))
    assert y.shape == ()                                  # matches torch .squeeze() -> scalar

    y_mimic = reference_forward(x, params, matmul_dtype=jnp.bfloat16)   # kernel-arithmetic twin
    y_f32 = reference_forward(x, params, matmul_dtype=jnp.float32)      # exact PyTorch-f32 math
    assert jnp.allclose(y, y_mimic, atol=5e-3, rtol=5e-3), (y, y_mimic)
    # bf16 matmul operands over an 8-step recurrence -> looser tolerance vs the pure-f32 reference.
    assert jnp.allclose(y, y_f32, atol=5e-2, rtol=5e-2), (y, y_f32)

    # --- batched path: many sequences amortize launch/DMA and fill the MXU rows --------------
    B = 16
    xb = jax.random.normal(jax.random.PRNGKey(1), (B, SEQ), jnp.float32)
    yb = jax.block_until_ready(simple_rnn_forward_batched(xb, packed))
    yb_ref = jnp.stack([reference_forward(xb[i], params, matmul_dtype=jnp.bfloat16)
                        for i in range(B)])
    assert yb.shape == (B,)
    assert jnp.allclose(yb, yb_ref, atol=5e-3, rtol=5e-3), (yb, yb_ref)

    # --- empty-input branch (pure wrapper path, mirrors x.numel() == 0 in PyTorch) -----------
    y_empty = jax.block_until_ready(simple_rnn_forward(jnp.zeros((0,), jnp.float32), packed))
    assert jnp.allclose(y_empty, params["lin_b"][0], atol=1e-6)

    print("KERNEL_OK")
</pallas_src>

<mosaic_0001>
module attributes {stable_mosaic.version = 11 : i64} {
  func.func @gru_linear_kernel(%arg0: i32, %arg1: memref<8x8xf32, #tpu.memory_space<vmem>>, %arg2: memref<64x192xbf16, #tpu.memory_space<vmem>>, %arg3: memref<8x192xf32, #tpu.memory_space<vmem>>, %arg4: memref<8x1xf32, #tpu.memory_space<vmem>>) attributes {dimension_semantics = [#tpu.dimension_semantics<parallel>], iteration_bounds = array<i64: 1>, scalar_prefetch = 0 : i64, scratch_operands = 0 : i64, tpu.core_type = #tpu.core_type<tc>, window_params = [{transform_indices = @transform_0, window_bounds = array<i64: 8, 8>}, {pipeline_mode = #tpu.pipeline_mode<synchronous>, transform_indices = @transform_1, window_bounds = array<i64: 64, 192>}, {pipeline_mode = #tpu.pipeline_mode<synchronous>, transform_indices = @transform_2, window_bounds = array<i64: 8, 192>}, {transform_indices = @transform_3, window_bounds = array<i64: 8, 1>}]} {
    %c0 = arith.constant 0 : index
    %c0_0 = arith.constant 0 : index
    %0 = vector.load %arg2[%c0, %c0_0] : memref<64x192xbf16, #tpu.memory_space<vmem>>, vector<64x192xbf16>
    %c0_1 = arith.constant 0 : index
    %c0_2 = arith.constant 0 : index
    %1 = vector.load %arg3[%c0_1, %c0_2] : memref<8x192xf32, #tpu.memory_space<vmem>>, vector<1x192xf32>
    %c1 = arith.constant 1 : index
    %c0_3 = arith.constant 0 : index
    %2 = vector.load %arg3[%c1, %c0_3] : memref<8x192xf32, #tpu.memory_space<vmem>>, vector<1x192xf32>
    %c2 = arith.constant 2 : index
    %c0_4 = arith.constant 0 : index
    %3 = vector.load %arg3[%c2, %c0_4] : memref<8x192xf32, #tpu.memory_space<vmem>>, vector<1x64xf32>
    %c3 = arith.constant 3 : index
    %c0_5 = arith.constant 0 : index
    %4 = vector.load %arg3[%c3, %c0_5] : memref<8x192xf32, #tpu.memory_space<vmem>>, vector<1x64xf32>
    %c4 = arith.constant 4 : index
    %c0_6 = arith.constant 0 : index
    %5 = vector.load %arg3[%c4, %c0_6] : memref<8x192xf32, #tpu.memory_space<vmem>>, vector<1x1xf32>
    %c0_7 = arith.constant 0 : index
    %c0_8 = arith.constant 0 : index
    %6 = vector.load %arg1[%c0_7, %c0_8] : memref<8x8xf32, #tpu.memory_space<vmem>>, vector<8x8xf32>
    %cst = arith.constant 0.000000e+00 : f32
    %7 = vector.broadcast %cst : f32 to vector<8x64xf32>
    %8 = vector.extract_strided_slice %6 {offsets = [0, 0], sizes = [8, 1], strides = [1, 1]} : vector<8x8xf32> to vector<8x1xf32>
    %9 = vector.broadcast %8 : vector<8x1xf32> to vector<8x192xf32>
    %10 = vector.broadcast %1 : vector<1x192xf32> to vector<8x192xf32>
    %11 = arith.mulf %9, %10 : vector<8x192xf32>
    %12 = vector.broadcast %2 : vector<1x192xf32> to vector<8x192xf32>
    %13 = arith.addf %11, %12 : vector<8x192xf32>
    %14 = arith.truncf %7 : vector<8x64xf32> to vector<8x64xbf16>
    %cst_9 = arith.constant dense<0.000000e+00> : vector<8x192xf32>
    %15 = tpu.matmul %14, %0, %cst_9 {dimension_numbers = #tpu.dot_dimension_numbers<[1], [0], [0], [1], [0, 0, 1, 1], [], []>} : vector<8x64xbf16>, vector<64x192xbf16>, vector<8x192xf32> -> vector<8x192xf32>
    %16 = vector.extract_strided_slice %13 {offsets = [0, 0], sizes = [8, 64], strides = [1, 1]} : vector<8x192xf32> to vector<8x64xf32>
    %17 = vector.extract_strided_slice %15 {offsets = [0, 0], sizes = [8, 64], strides = [1, 1]} : vector<8x192xf32> to vector<8x64xf32>
    %18 = arith.addf %16, %17 : vector<8x64xf32>
    %19 = arith.negf %18 : vector<8x64xf32>
    %20 = math.exp %19 : vector<8x64xf32>
    %cst_10 = arith.constant 1.000000e+00 : f32
    %21 = vector.broadcast %cst_10 : f32 to vector<8x64xf32>
    %22 = arith.addf %21, %20 : vector<8x64xf32>
    %23 = arith.divf %21, %22 : vector<8x64xf32>
    %24 = vector.extract_strided_slice %13 {offsets = [0, 64], sizes = [8, 64], strides = [1, 1]} : vector<8x192xf32> to vector<8x64xf32>
    %25 = vector.extract_strided_slice %15 {offsets = [0, 64], sizes = [8, 64], strides = [1, 1]} : vector<8x192xf32> to vector<8x64xf32>
    %26 = arith.addf %24, %25 : vector<8x64xf32>
    %27 = arith.negf %26 : vector<8x64xf32>
    %28 = math.exp %27 : vector<8x64xf32>
    %cst_11 = arith.constant 1.000000e+00 : f32
    %29 = vector.broadcast %cst_11 : f32 to vector<8x64xf32>
    %30 = arith.addf %29, %28 : vector<8x64xf32>
    %31 = arith.divf %29, %30 : vector<8x64xf32>
    %32 = vector.extract_strided_slice %13 {offsets = [0, 128], sizes = [8, 64], strides = [1, 1]} : vector<8x192xf32> to vector<8x64xf32>
    %33 = vector.extract_strided_slice %15 {offsets = [0, 128], sizes = [8, 64], strides = [1, 1]} : vector<8x192xf32> to vector<8x64xf32>
    %34 = vector.broadcast %3 : vector<1x64xf32> to vector<8x64xf32>
    %35 = arith.addf %33, %34 : vector<8x64xf32>
    %36 = arith.mulf %23, %35 : vector<8x64xf32>
    %37 = arith.addf %32, %36 : vector<8x64xf32>
    %38 = math.tanh %37 : vector<8x64xf32>
    %cst_12 = arith.constant 1.000000e+00 : f32
    %39 = vector.broadcast %cst_12 : f32 to vector<8x64xf32>
    %40 = arith.subf %39, %31 : vector<8x64xf32>
    %41 = arith.mulf %40, %38 : vector<8x64xf32>
    %42 = arith.mulf %31, %7 : vector<8x64xf32>
    %43 = arith.addf %41, %42 : vector<8x64xf32>
    %44 = vector.extract_strided_slice %6 {offsets = [0, 1], sizes = [8, 1], strides = [1, 1]} : vector<8x8xf32> to vector<8x1xf32>
    %45 = vector.broadcast %44 : vector<8x1xf32> to vector<8x192xf32>
    %46 = vector.broadcast %1 : vector<1x192xf32> to vector<8x192xf32>
    %47 = arith.mulf %45, %46 : vector<8x192xf32>
    %48 = vector.broadcast %2 : vector<1x192xf32> to vector<8x192xf32>
    %49 = arith.addf %47, %48 : vector<8x192xf32>
    %50 = arith.truncf %43 : vector<8x64xf32> to vector<8x64xbf16>
    %cst_13 = arith.constant dense<0.000000e+00> : vector<8x192xf32>
    %51 = tpu.matmul %50, %0, %cst_13 {dimension_numbers = #tpu.dot_dimension_numbers<[1], [0], [0], [1], [0, 0, 1, 1], [], []>} : vector<8x64xbf16>, vector<64x192xbf16>, vector<8x192xf32> -> vector<8x192xf32>
    %52 = vector.extract_strided_slice %49 {offsets = [0, 0], sizes = [8, 64], strides = [1, 1]} : vector<8x192xf32> to vector<8x64xf32>
    %53 = vector.extract_strided_slice %51 {offsets = [0, 0], sizes = [8, 64], strides = [1, 1]} : vector<8x192xf32> to vector<8x64xf32>
    %54 = arith.addf %52, %53 : vector<8x64xf32>
    %55 = arith.negf %54 : vector<8x64xf32>
    %56 = math.exp %55 : vector<8x64xf32>
    %cst_14 = arith.constant 1.000000e+00 : f32
    %57 = vector.broadcast %cst_14 : f32 to vector<8x64xf32>
    %58 = arith.addf %57, %56 : vector<8x64xf32>
    %59 = arith.divf %57, %58 : vector<8x64xf32>
    %60 = vector.extract_strided_slice %49 {offsets = [0, 64], sizes = [8, 64], strides = [1, 1]} : vector<8x192xf32> to vector<8x64xf32>
    %61 = vector.extract_strided_slice %51 {offsets = [0, 64], sizes = [8, 64], strides = [1, 1]} : vector<8x192xf32> to vector<8x64xf32>
    %62 = arith.addf %60, %61 : vector<8x64xf32>
    %63 = arith.negf %62 : vector<8x64xf32>
    %64 = math.exp %63 : vector<8x64xf32>
    %cst_15 = arith.constant 1.000000e+00 : f32
    %65 = vector.broadcast %cst_15 : f32 to vector<8x64xf32>
    %66 = arith.addf %65, %64 : vector<8x64xf32>
    %67 = arith.divf %65, %66 : vector<8x64xf32>
    %68 = vector.extract_strided_slice %49 {offsets = [0, 128], sizes = [8, 64], strides = [1, 1]} : vector<8x192xf32> to vector<8x64xf32>
    %69 = vector.extract_strided_slice %51 {offsets = [0, 128], sizes = [8, 64], strides = [1, 1]} : vector<8x192xf32> to vector<8x64xf32>
    %70 = vector.broadcast %3 : vector<1x64xf32> to vector<8x64xf32>
    %71 = arith.addf %69, %70 : vector<8x64xf32>
    %72 = arith.mulf %59, %71 : vector<8x64xf32>
    %73 = arith.addf %68, %72 : vector<8x64xf32>
    %74 = math.tanh %73 : vector<8x64xf32>
    %cst_16 = arith.constant 1.000000e+00 : f32
    %75 = vector.broadcast %cst_16 : f32 to vector<8x64xf32>
    %76 = arith.subf %75, %67 : vector<8x64xf32>
    %77 = arith.mulf %76, %74 : vector<8x64xf32>
    %78 = arith.mulf %67, %43 : vector<8x64xf32>
    %79 = arith.addf %77, %78 : vector<8x64xf32>
    %80 = vector.extract_strided_slice %6 {offsets = [0, 2], sizes = [8, 1], strides = [1, 1]} : vector<8x8xf32> to vector<8x1xf32>
    %81 = vector.broadcast %80 : vector<8x1xf32> to vector<8x192xf32>
    %82 = vector.broadcast %1 : vector<1x192xf32> to vector<8x192xf32>
    %83 = arith.mulf %81, %82 : vector<8x192xf32>
    %84 = vector.broadcast %2 : vector<1x192xf32> to vector<8x192xf32>
    %85 = arith.addf %83, %84 : vector<8x192xf32>
    %86 = arith.truncf %79 : vector<8x64xf32> to vector<8x64xbf16>
    %cst_17 = arith.constant dense<0.000000e+00> : vector<8x192xf32>
    %87 = tpu.matmul %86, %0, %cst_17 {dimension_numbers = #tpu.dot_dimension_numbers<[1], [0], [0], [1], [0, 0, 1, 1], [], []>} : vector<8x64xbf16>, vector<64x192xbf16>, vector<8x192xf32> -> vector<8x192xf32>
    %88 = vector.extract_strided_slice %85 {offsets = [0, 0], sizes = [8, 64], strides = [1, 1]} : vector<8x192xf32> to vector<8x64xf32>
    %89 = vector.extract_strided_slice %87 {offsets = [0, 0], sizes = [8, 64], strides = [1, 1]} : vector<8x192xf32> to vector<8x64xf32>
    %90 = arith.addf %88, %89 : vector<8x64xf32>
    %91 = arith.negf %90 : vector<8x64xf32>
    %92 = math.exp %91 : vector<8x64xf32>
    %cst_18 = arith.constant 1.000000e+00 : f32
    %93 = vector.broadcast %cst_18 : f32 to vector<8x64xf32>
    %94 = arith.addf %93, %92 : vector<8x64xf32>
    %95 = arith.divf %93, %94 : vector<8x64xf32>
    %96 = vector.extract_strided_slice %85 {offsets = [0, 64], sizes = [8, 64], strides = [1, 1]} : vector<8x192xf32> to vector<8x64xf32>
    %97 = vector.extract_strided_slice %87 {offsets = [0, 64], sizes = [8, 64], strides = [1, 1]} : vector<8x192xf32> to vector<8x64xf32>
    %98 = arith.addf %96, %97 : vector<8x64xf32>
    %99 = arith.negf %98 : vector<8x64xf32>
    %100 = math.exp %99 : vector<8x64xf32>
    %cst_19 = arith.constant 1.000000e+00 : f32
    %101 = vector.broadcast %cst_19 : f32 to vector<8x64xf32>
    %102 = arith.addf %101, %100 : vector<8x64xf32>
    %103 = arith.divf %101, %102 : vector<8x64xf32>
    %104 = vector.extract_strided_slice %85 {offsets = [0, 128], sizes = [8, 64], strides = [1, 1]} : vector<8x192xf32> to vector<8x64xf32>
    %105 = vector.extract_strided_slice %87 {offsets = [0, 128], sizes = [8, 64], strides = [1, 1]} : vector<8x192xf32> to vector<8x64xf32>
    %106 = vector.broadcast %3 : vector<1x64xf32> to vector<8x64xf32>
    %107 = arith.addf %105, %106 : vector<8x64xf32>
    %108 = arith.mulf %95, %107 : vector<8x64xf32>
    %109 = arith.addf %104, %108 : vector<8x64xf32>
    %110 = math.tanh %109 : vector<8x64xf32>
    %cst_20 = arith.constant 1.000000e+00 : f32
    %111 = vector.broadcast %cst_20 : f32 to vector<8x64xf32>
    %112 = arith.subf %111, %103 : vector<8x64xf32>
    %113 = arith.mulf %112, %110 : vector<8x64xf32>
    %114 = arith.mulf %103, %79 : vector<8x64xf32>
    %115 = arith.addf %113, %114 : vector<8x64xf32>
    %116 = vector.extract_strided_slice %6 {offsets = [0, 3], sizes = [8, 1], strides = [1, 1]} : vector<8x8xf32> to vector<8x1xf32>
    %117 = vector.broadcast %116 : vector<8x1xf32> to vector<8x192xf32>
    %118 = vector.broadcast %1 : vector<1x192xf32> to vector<8x192xf32>
    %119 = arith.mulf %117, %118 : vector<8x192xf32>
    %120 = vector.broadcast %2 : vector<1x192xf32> to vector<8x192xf32>
    %121 = arith.addf %119, %120 : vector<8x192xf32>
    %122 = arith.truncf %115 : vector<8x64xf32> to vector<8x64xbf16>
    %cst_21 = arith.constant dense<0.000000e+00> : vector<8x192xf32>
    %123 = tpu.matmul %122, %0, %cst_21 {dimension_numbers = #tpu.dot_dimension_numbers<[1], [0], [0], [1], [0, 0, 1, 1], [], []>} : vector<8x64xbf16>, vector<64x192xbf16>, vector<8x192xf32> -> vector<8x192xf32>
    %124 = vector.extract_strided_slice %121 {offsets = [0, 0], sizes = [8, 64], strides = [1, 1]} : vector<8x192xf32> to vector<8x64xf32>
    %125 = vector.extract_strided_slice %123 {offsets = [0, 0], sizes = [8, 64], strides = [1, 1]} : vector<8x192xf32> to vector<8x64xf32>
    %126 = arith.addf %124, %125 : vector<8x64xf32>
    %127 = arith.negf %126 : vector<8x64xf32>
    %128 = math.exp %127 : vector<8x64xf32>
    %cst_22 = arith.constant 1.000000e+00 : f32
    %129 = vector.broadcast %cst_22 : f32 to vector<8x64xf32>
    %130 = arith.addf %129, %128 : vector<8x64xf32>
    %131 = arith.divf %129, %130 : vector<8x64xf32>
    %132 = vector.extract_strided_slice %121 {offsets = [0, 64], sizes = [8, 64], strides = [1, 1]} : vector<8x192xf32> to vector<8x64xf32>
    %133 = vector.extract_strided_slice %123 {offsets = [0, 64], sizes = [8, 64], strides = [1, 1]} : vector<8x192xf32> to vector<8x64xf32>
    %134 = arith.addf %132, %133 : vector<8x64xf32>
    %135 = arith.negf %134 : vector<8x64xf32>
    %136 = math.exp %135 : vector<8x64xf32>
    %cst_23 = arith.constant 1.000000e+00 : f32
    %137 = vector.broadcast %cst_23 : f32 to vector<8x64xf32>
    %138 = arith.addf %137, %136 : vector<8x64xf32>
    %139 = arith.divf %137, %138 : vector<8x64xf32>
    %140 = vector.extract_strided_slice %121 {offsets = [0, 128], sizes = [8, 64], strides = [1, 1]} : vector<8x192xf32> to vector<8x64xf32>
    %141 = vector.extract_strided_slice %123 {offsets = [0, 128], sizes = [8, 64], strides = [1, 1]} : vector<8x192xf32> to vector<8x64xf32>
    %142 = vector.broadcast %3 : vector<1x64xf32> to vector<8x64xf32>
    %143 = arith.addf %141, %142 : vector<8x64xf32>
    %144 = arith.mulf %131, %143 : vector<8x64xf32>
    %145 = arith.addf %140, %144 : vector<8x64xf32>
    %146 = math.tanh %145 : vector<8x64xf32>
    %cst_24 = arith.constant 1.000000e+00 : f32
    %147 = vector.broadcast %cst_24 : f32 to vector<8x64xf32>
    %148 = arith.subf %147, %139 : vector<8x64xf32>
    %149 = arith.mulf %148, %146 : vector<8x64xf32>
    %150 = arith.mulf %139, %115 : vector<8x64xf32>
    %151 = arith.addf %149, %150 : vector<8x64xf32>
    %152 = vector.extract_strided_slice %6 {offsets = [0, 4], sizes = [8, 1], strides = [1, 1]} : vector<8x8xf32> to vector<8x1xf32>
    %153 = vector.broadcast %152 : vector<8x1xf32> to vector<8x192xf32>
    %154 = vector.broadcast %1 : vector<1x192xf32> to vector<8x192xf32>
    %155 = arith.mulf %153, %154 : vector<8x192xf32>
    %156 = vector.broadcast %2 : vector<1x192xf32> to vector<8x192xf32>
    %157 = arith.addf %155, %156 : vector<8x192xf32>
    %158 = arith.truncf %151 : vector<8x64xf32> to vector<8x64xbf16>
    %cst_25 = arith.constant dense<0.000000e+00> : vector<8x192xf32>
    %159 = tpu.matmul %158, %0, %cst_25 {dimension_numbers = #tpu.dot_dimension_numbers<[1], [0], [0], [1], [0, 0, 1, 1], [], []>} : vector<8x64xbf16>, vector<64x192xbf16>, vector<8x192xf32> -> vector<8x192xf32>
    %160 = vector.extract_strided_slice %157 {offsets = [0, 0], sizes = [8, 64], strides = [1, 1]} : vector<8x192xf32> to vector<8x64xf32>
    %161 = vector.extract_strided_slice %159 {offsets = [0, 0], sizes = [8, 64], strides = [1, 1]} : vector<8x192xf32> to vector<8x64xf32>
    %162 = arith.addf %160, %161 : vector<8x64xf32>
    %163 = arith.negf %162 : vector<8x64xf32>
    %164 = math.exp %163 : vector<8x64xf32>
    %cst_26 = arith.constant 1.000000e+00 : f32
    %165 = vector.broadcast %cst_26 : f32 to vector<8x64xf32>
    %166 = arith.addf %165, %164 : vector<8x64xf32>
    %167 = arith.divf %165, %166 : vector<8x64xf32>
    %168 = vector.extract_strided_slice %157 {offsets = [0, 64], sizes = [8, 64], strides = [1, 1]} : vector<8x192xf32> to vector<8x64xf32>
    %169 = vector.extract_strided_slice %159 {offsets = [0, 64], sizes = [8, 64], strides = [1, 1]} : vector<8x192xf32> to vector<8x64xf32>
    %170 = arith.addf %168, %169 : vector<8x64xf32>
    %171 = arith.negf %170 : vector<8x64xf32>
    %172 = math.exp %171 : vector<8x64xf32>
    %cst_27 = arith.constant 1.000000e+00 : f32
    %173 = vector.broadcast %cst_27 : f32 to vector<8x64xf32>
    %174 = arith.addf %173, %172 : vector<8x64xf32>
    %175 = arith.divf %173, %174 : vector<8x64xf32>
    %176 = vector.extract_strided_slice %157 {offsets = [0, 128], sizes = [8, 64], strides = [1, 1]} : vector<8x192xf32> to vector<8x64xf32>
    %177 = vector.extract_strided_slice %159 {offsets = [0, 128], sizes = [8, 64], strides = [1, 1]} : vector<8x192xf32> to vector<8x64xf32>
    %178 = vector.broadcast %3 : vector<1x64xf32> to vector<8x64xf32>
    %179 = arith.addf %177, %178 : vector<8x64xf32>
    %180 = arith.mulf %167, %179 : vector<8x64xf32>
    %181 = arith.addf %176, %180 : vector<8x64xf32>
    %182 = math.tanh %181 : vector<8x64xf32>
    %cst_28 = arith.constant 1.000000e+00 : f32
    %183 = vector.broadcast %cst_28 : f32 to vector<8x64xf32>
    %184 = arith.subf %183, %175 : vector<8x64xf32>
    %185 = arith.mulf %184, %182 : vector<8x64xf32>
    %186 = arith.mulf %175, %151 : vector<8x64xf32>
    %187 = arith.addf %185, %186 : vector<8x64xf32>
    %188 = vector.extract_strided_slice %6 {offsets = [0, 5], sizes = [8, 1], strides = [1, 1]} : vector<8x8xf32> to vector<8x1xf32>
    %189 = vector.broadcast %188 : vector<8x1xf32> to vector<8x192xf32>
    %190 = vector.broadcast %1 : vector<1x192xf32> to vector<8x192xf32>
    %191 = arith.mulf %189, %190 : vector<8x192xf32>
    %192 = vector.broadcast %2 : vector<1x192xf32> to vector<8x192xf32>
    %193 = arith.addf %191, %192 : vector<8x192xf32>
    %194 = arith.truncf %187 : vector<8x64xf32> to vector<8x64xbf16>
    %cst_29 = arith.constant dense<0.000000e+00> : vector<8x192xf32>
    %195 = tpu.matmul %194, %0, %cst_29 {dimension_numbers = #tpu.dot_dimension_numbers<[1], [0], [0], [1], [0, 0, 1, 1], [], []>} : vector<8x64xbf16>, vector<64x192xbf16>, vector<8x192xf32> -> vector<8x192xf32>
    %196 = vector.extract_strided_slice %193 {offsets = [0, 0], sizes = [8, 64], strides = [1, 1]} : vector<8x192xf32> to vector<8x64xf32>
    %197 = vector.extract_strided_slice %195 {offsets = [0, 0], sizes = [8, 64], strides = [1, 1]} : vector<8x192xf32> to vector<8x64xf32>
    %198 = arith.addf %196, %197 : vector<8x64xf32>
    %199 = arith.negf %198 : vector<8x64xf32>
    %200 = math.exp %199 : vector<8x64xf32>
    %cst_30 = arith.constant 1.000000e+00 : f32
    %201 = vector.broadcast %cst_30 : f32 to vector<8x64xf32>
    %202 = arith.addf %201, %200 : vector<8x64xf32>
    %203 = arith.divf %201, %202 : vector<8x64xf32>
    %204 = vector.extract_strided_slice %193 {offsets = [0, 64], sizes = [8, 64], strides = [1, 1]} : vector<8x192xf32> to vector<8x64xf32>
    %205 = vector.extract_strided_slice %195 {offsets = [0, 64], sizes = [8, 64], strides = [1, 1]} : vector<8x192xf32> to vector<8x64xf32>
    %206 = arith.addf %204, %205 : vector<8x64xf32>
    %207 = arith.negf %206 : vector<8x64xf32>
    %208 = math.exp %207 : vector<8x64xf32>
    %cst_31 = arith.constant 1.000000e+00 : f32
    %209 = vector.broadcast %cst_31 : f32 to vector<8x64xf32>
    %210 = arith.addf %209, %208 : vector<8x64xf32>
    %211 = arith.divf %209, %210 : vector<8x64xf32>
    %212 = vector.extract_strided_slice %193 {offsets = [0, 128], sizes = [8, 64], strides = [1, 1]} : vector<8x192xf32> to vector<8x64xf32>
    %213 = vector.extract_strided_slice %195 {offsets = [0, 128], sizes = [8, 64], strides = [1, 1]} : vector<8x192xf32> to vector<8x64xf32>
    %214 = vector.broadcast %3 : vector<1x64xf32> to vector<8x64xf32>
    %215 = arith.addf %213, %214 : vector<8x64xf32>
    %216 = arith.mulf %203, %215 : vector<8x64xf32>
    %217 = arith.addf %212, %216 : vector<8x64xf32>
    %218 = math.tanh %217 : vector<8x64xf32>
    %cst_32 = arith.constant 1.000000e+00 : f32
    %219 = vector.broadcast %cst_32 : f32 to vector<8x64xf32>
    %220 = arith.subf %219, %211 : vector<8x64xf32>
    %221 = arith.mulf %220, %218 : vector<8x64xf32>
    %222 = arith.mulf %211, %187 : vector<8x64xf32>
    %223 = arith.addf %221, %222 : vector<8x64xf32>
    %224 = vector.extract_strided_slice %6 {offsets = [0, 6], sizes = [8, 1], strides = [1, 1]} : vector<8x8xf32> to vector<8x1xf32>
    %225 = vector.broadcast %224 : vector<8x1xf32> to vector<8x192xf32>
    %226 = vector.broadcast %1 : vector<1x192xf32> to vector<8x192xf32>
    %227 = arith.mulf %225, %226 : vector<8x192xf32>
    %228 = vector.broadcast %2 : vector<1x192xf32> to vector<8x192xf32>
    %229 = arith.addf %227, %228 : vector<8x192xf32>
    %230 = arith.truncf %223 : vector<8x64xf32> to vector<8x64xbf16>
    %cst_33 = arith.constant dense<0.000000e+00> : vector<8x192xf32>
    %231 = tpu.matmul %230, %0, %cst_33 {dimension_numbers = #tpu.dot_dimension_numbers<[1], [0], [0], [1], [0, 0, 1, 1], [], []>} : vector<8x64xbf16>, vector<64x192xbf16>, vector<8x192xf32> -> vector<8x192xf32>
    %232 = vector.extract_strided_slice %229 {offsets = [0, 0], sizes = [8, 64], strides = [1, 1]} : vector<8x192xf32> to vector<8x64xf32>
    %233 = vector.extract_strided_slice %231 {offsets = [0, 0], sizes = [8, 64], strides = [1, 1]} : vector<8x192xf32> to vector<8x64xf32>
    %234 = arith.addf %232, %233 : vector<8x64xf32>
    %235 = arith.negf %234 : vector<8x64xf32>
    %236 = math.exp %235 : vector<8x64xf32>
    %cst_34 = arith.constant 1.000000e+00 : f32
    %237 = vector.broadcast %cst_34 : f32 to vector<8x64xf32>
    %238 = arith.addf %237, %236 : vector<8x64xf32>
    %239 = arith.divf %237, %238 : vector<8x64xf32>
    %240 = vector.extract_strided_slice %229 {offsets = [0, 64], sizes = [8, 64], strides = [1, 1]} : vector<8x192xf32> to vector<8x64xf32>
    %241 = vector.extract_strided_slice %231 {offsets = [0, 64], sizes = [8, 64], strides = [1, 1]} : vector<8x192xf32> to vector<8x64xf32>
    %242 = arith.addf %240, %241 : vector<8x64xf32>
    %243 = arith.negf %242 : vector<8x64xf32>
    %244 = math.exp %243 : vector<8x64xf32>
    %cst_35 = arith.constant 1.000000e+00 : f32
    %245 = vector.broadcast %cst_35 : f32 to vector<8x64xf32>
    %246 = arith.addf %245, %244 : vector<8x64xf32>
    %247 = arith.divf %245, %246 : vector<8x64xf32>
    %248 = vector.extract_strided_slice %229 {offsets = [0, 128], sizes = [8, 64], strides = [1, 1]} : vector<8x192xf32> to vector<8x64xf32>
    %249 = vector.extract_strided_slice %231 {offsets = [0, 128], sizes = [8, 64], strides = [1, 1]} : vector<8x192xf32> to vector<8x64xf32>
    %250 = vector.broadcast %3 : vector<1x64xf32> to vector<8x64xf32>
    %251 = arith.addf %249, %250 : vector<8x64xf32>
    %252 = arith.mulf %239, %251 : vector<8x64xf32>
    %253 = arith.addf %248, %252 : vector<8x64xf32>
    %254 = math.tanh %253 : vector<8x64xf32>
    %cst_36 = arith.constant 1.000000e+00 : f32
    %255 = vector.broadcast %cst_36 : f32 to vector<8x64xf32>
    %256 = arith.subf %255, %247 : vector<8x64xf32>
    %257 = arith.mulf %256, %254 : vector<8x64xf32>
    %258 = arith.mulf %247, %223 : vector<8x64xf32>
    %259 = arith.addf %257, %258 : vector<8x64xf32>
    %260 = vector.extract_strided_slice %6 {offsets = [0, 7], sizes = [8, 1], strides = [1, 1]} : vector<8x8xf32> to vector<8x1xf32>
    %261 = vector.broadcast %260 : vector<8x1xf32> to vector<8x192xf32>
    %262 = vector.broadcast %1 : vector<1x192xf32> to vector<8x192xf32>
    %263 = arith.mulf %261, %262 : vector<8x192xf32>
    %264 = vector.broadcast %2 : vector<1x192xf32> to vector<8x192xf32>
    %265 = arith.addf %263, %264 : vector<8x192xf32>
    %266 = arith.truncf %259 : vector<8x64xf32> to vector<8x64xbf16>
    %cst_37 = arith.constant dense<0.000000e+00> : vector<8x192xf32>
    %267 = tpu.matmul %266, %0, %cst_37 {dimension_numbers = #tpu.dot_dimension_numbers<[1], [0], [0], [1], [0, 0, 1, 1], [], []>} : vector<8x64xbf16>, vector<64x192xbf16>, vector<8x192xf32> -> vector<8x192xf32>
    %268 = vector.extract_strided_slice %265 {offsets = [0, 0], sizes = [8, 64], strides = [1, 1]} : vector<8x192xf32> to vector<8x64xf32>
    %269 = vector.extract_strided_slice %267 {offsets = [0, 0], sizes = [8, 64], strides = [1, 1]} : vector<8x192xf32> to vector<8x64xf32>
    %270 = arith.addf %268, %269 : vector<8x64xf32>
    %271 = arith.negf %270 : vector<8x64xf32>
    %272 = math.exp %271 : vector<8x64xf32>
    %cst_38 = arith.constant 1.000000e+00 : f32
    %273 = vector.broadcast %cst_38 : f32 to vector<8x64xf32>
    %274 = arith.addf %273, %272 : vector<8x64xf32>
    %275 = arith.divf %273, %274 : vector<8x64xf32>
    %276 = vector.extract_strided_slice %265 {offsets = [0, 64], sizes = [8, 64], strides = [1, 1]} : vector<8x192xf32> to vector<8x64xf32>
    %277 = vector.extract_strided_slice %267 {offsets = [0, 64], sizes = [8, 64], strides = [1, 1]} : vector<8x192xf32> to vector<8x64xf32>
    %278 = arith.addf %276, %277 : vector<8x64xf32>
    %279 = arith.negf %278 : vector<8x64xf32>
    %280 = math.exp %279 : vector<8x64xf32>
    %cst_39 = arith.constant 1.000000e+00 : f32
    %281 = vector.broadcast %cst_39 : f32 to vector<8x64xf32>
    %282 = arith.addf %281, %280 : vector<8x64xf32>
    %283 = arith.divf %281, %282 : vector<8x64xf32>
    %284 = vector.extract_strided_slice %265 {offsets = [0, 128], sizes = [8, 64], strides = [1, 1]} : vector<8x192xf32> to vector<8x64xf32>
    %285 = vector.extract_strided_slice %267 {offsets = [0, 128], sizes = [8, 64], strides = [1, 1]} : vector<8x192xf32> to vector<8x64xf32>
    %286 = vector.broadcast %3 : vector<1x64xf32> to vector<8x64xf32>
    %287 = arith.addf %285, %286 : vector<8x64xf32>
    %288 = arith.mulf %275, %287 : vector<8x64xf32>
    %289 = arith.addf %284, %288 : vector<8x64xf32>
    %290 = math.tanh %289 : vector<8x64xf32>
    %cst_40 = arith.constant 1.000000e+00 : f32
    %291 = vector.broadcast %cst_40 : f32 to vector<8x64xf32>
    %292 = arith.subf %291, %283 : vector<8x64xf32>
    %293 = arith.mulf %292, %290 : vector<8x64xf32>
    %294 = arith.mulf %283, %259 : vector<8x64xf32>
    %295 = arith.addf %293, %294 : vector<8x64xf32>
    %296 = vector.broadcast %4 : vector<1x64xf32> to vector<8x64xf32>
    %297 = arith.mulf %295, %296 : vector<8x64xf32>
    %cst_41 = arith.constant dense<0.000000e+00> : vector<8xf32>
    %298 = vector.multi_reduction <add>, %297, %cst_41 [1] : vector<8x64xf32> to vector<8xf32>
    %299 = vector.shape_cast %298 : vector<8xf32> to vector<8x1xf32>
    %300 = vector.broadcast %5 : vector<1x1xf32> to vector<8x1xf32>
    %301 = arith.addf %299, %300 : vector<8x1xf32>
    %c0_42 = arith.constant 0 : index
    %c0_43 = arith.constant 0 : index
    %302 = vector.load %arg4[%c0_42, %c0_43] : memref<8x1xf32, #tpu.memory_space<vmem>>, vector<8x1xf32>
    tpu.vector_store %arg4[%c0_42, %c0_43], %301 {strides = array<i32>} : memref<8x1xf32, #tpu.memory_space<vmem>>, vector<8x1xf32>,
    return
  }
  func.func @transform_0(%arg0: i32) -> (i32, i32) {
    %c0_i32 = arith.constant 0 : i32
    %c0_i32_0 = arith.constant 0 : i32
    return %arg0, %c0_i32 : i32, i32
  }
  func.func @transform_1(%arg0: i32) -> (i32, i32) {
    %c0_i32 = arith.constant 0 : i32
    %c0_i32_0 = arith.constant 0 : i32
    %c0_i32_1 = arith.constant 0 : i32
    return %c0_i32, %c0_i32_0 : i32, i32
  }
  func.func @transform_2(%arg0: i32) -> (i32, i32) {
    %c0_i32 = arith.constant 0 : i32
    %c0_i32_0 = arith.constant 0 : i32
    %c0_i32_1 = arith.constant 0 : i32
    return %c0_i32, %c0_i32_0 : i32, i32
  }
  func.func @transform_3(%arg0: i32) -> (i32, i32) {
    %c0_i32 = arith.constant 0 : i32
    %c0_i32_0 = arith.constant 0 : i32
    return %arg0, %c0_i32 : i32, i32
  }
}

</mosaic_0001>

<llo_original>
// kernel: tpu_custom_call.1
$region0: #{tpu_custom_call.1}
  #allocation0 [shape = 'u32[]', space=smem, size = 0x4, offset = 0x4, fixed_abs, tag = 'smem constant byte address 0x4 - core index']
  #allocation1 [shape = 'u32[144,128]{1,0:T(1,128)}', space=vmem, size = 0x12000, scoped, tag = 'internal scratch']
  %s0 = inlined_call_operand.hbm [shape: f32[8,8], index: 0, kind: input, shape index: {}]
  %s1 = inlined_call_operand.hbm [shape: bf16[64,192], index: 1, kind: input, shape index: {}]
  %s2 = inlined_call_operand.hbm [shape: f32[8,192], index: 2, kind: input, shape index: {}]
  %s3 = inlined_call_operand.vmem [shape: f32[8,1], index: 3, kind: output, shape index: {}]
  %s4 = sld [smem:[#allocation0]]
  $region34: #{tpu_custom_call.1} parent=0
    _
  %s6 = ssub.s32 1, %s4
  %s7 = scalar_select 0, %s6, %s4
  $region1: #{tpu_custom_call.1} parent=0
    #allocation2 [shape = 'u8[4096]{0}', space=vmem, size = 0x1000, scoped, tag = 'input window, operand 0, single buffered']
    #allocation3 [shape = 's32[1]{0}', space=sflag, size = 0x4, scoped, tag = 'scoped memory for tpu_custom_call.1']
    #allocation4 [shape = 'u8[32768]{0}', space=vmem, size = 0x8000, scoped, tag = 'input window, operand 1, single buffered']
    #allocation5 [shape = 's32[1]{0}', space=sflag, size = 0x4, scoped, tag = 'scoped memory for tpu_custom_call.1']
    #allocation6 [shape = 'u8[8192]{0}', space=vmem, size = 0x2000, scoped, tag = 'input window, operand 2, single buffered']
    %8 = vsyncpa [#allocation3], 0
    %9 = vsyncpa [#allocation5], 0
    // Predicated region
    $region2: #{tpu_custom_call.1} parent=1 // pred_check
      _
    $region3: #{tpu_custom_call.1} parent=1 // pred_check_branch
      %11 = sbr.rel (0) target = $region5
    $region4: #{tpu_custom_call.1} parent=1 // pred_region
      %s13 = ssub.s32 128, 128
      %14 = vsyncadd [#allocation3], %s13
      %s16 = sshll.u32 [#allocation2], 4
      %s17 = int_to_ptr.vmem [resolvable:$true] %s16
      %19 = dma.hbm_to_vmem [thread:$0]  %s0, 128, %s17, [#allocation3]
    $region5: #{tpu_custom_call.1} parent=1 // pred_fallthru
      _
    // Predicated region
    $region6: #{tpu_custom_call.1} parent=1 // pred_check
      _
    $region7: #{tpu_custom_call.1} parent=1 // pred_check_branch
      %21 = sbr.rel (0) target = $region9
    $region8: #{tpu_custom_call.1} parent=1 // pred_region
      %s23 = ssub.s32 1024, 1024
      %24 = vsyncadd [#allocation5], %s23
      %s25 = sshll.u32 [#allocation4], 4
      %s26 = int_to_ptr.vmem [resolvable:$true] %s25
      %31 = dma.hbm_to_vmem [thread:$0]  %s1, 1024, %s26, [#allocation5], 128, 128, 8
    $region9: #{tpu_custom_call.1} parent=1 // pred_fallthru
      _
    // Predicated region
    $region10: #{tpu_custom_call.1} parent=1 // pred_check
      _
    $region11: #{tpu_custom_call.1} parent=1 // pred_check_branch
      %33 = sbr.rel (0) target = $region13
    $region12: #{tpu_custom_call.1} parent=1 // pred_region
      %s35 = ssub.s32 256, 256
      %36 = vsyncadd [#allocation5], %s35
      %s38 = sshll.u32 [#allocation6], 4
      %s39 = int_to_ptr.vmem [resolvable:$true] %s38
      %41 = dma.hbm_to_vmem [thread:$0]  %s2, 256, %s39, [#allocation5]
    $region13: #{tpu_custom_call.1} parent=1 // pred_fallthru
      _
    // Predicated region
    $region14: #{tpu_custom_call.1} parent=1 // pred_check
      _
    $region15: #{tpu_custom_call.1} parent=1 // pred_check_branch
      %43 = sbr.rel (0) target = $region17
    $region16: #{tpu_custom_call.1} parent=1 // pred_region
      %44 = dma.done [#allocation3], 128
    $region17: #{tpu_custom_call.1} parent=1 // pred_fallthru
      _
    // Predicated region
    $region18: #{tpu_custom_call.1} parent=1 // pred_check
      _
    $region19: #{tpu_custom_call.1} parent=1 // pred_check_branch
      %46 = sbr.rel (0) target = $region21
    $region20: #{tpu_custom_call.1} parent=1 // pred_region
      %47 = dma.done [#allocation5], 1024
    $region21: #{tpu_custom_call.1} parent=1 // pred_fallthru
      _
    // Predicated region
    $region22: #{tpu_custom_call.1} parent=1 // pred_check
      _
    $region23: #{tpu_custom_call.1} parent=1 // pred_check_branch
      %49 = sbr.rel (0) target = $region25
    $region24: #{tpu_custom_call.1} parent=1 // pred_region
      %50 = dma.done [#allocation5], 256
    $region25: #{tpu_custom_call.1} parent=1 // pred_fallthru
      _
    %v52 = vld [vmem:[#allocation4] sm:$0xff]
    %v53 = vld [vmem:[#allocation4 + $0x8] sm:$0xff]
    %v54 = vld [vmem:[#allocation4 + $0x10] sm:$0xff]
    %v55 = vld [vmem:[#allocation4 + $0x18] sm:$0xff]
    %v56 = vld [vmem:[#allocation4 + $0x20] sm:$0xff]
    %v57 = vld [vmem:[#allocation4 + $0x28] sm:$0xff]
    %v58 = vld [vmem:[#allocation4 + $0x30] sm:$0xff]
    %v59 = vld [vmem:[#allocation4 + $0x38] sm:$0xff]
    %v60 = vld [vmem:[#allocation6] ss:$8 sm:$0x3]
    %s61 = scalar_lea.vmem [#allocation6], 1
    %v62 = vld [vmem:[%s61] ss:$8 sm:$0x3]
    %v63 = vld [vmem:[#allocation6 + $0x2] ss:$0 sm:$0xff]
    %v64 = vld [vmem:[#allocation6 + $0x3] ss:$0 sm:$0xff]
    %v65 = vld [vmem:[#allocation6 + $0x4] ss:$0 sm:$0xff]
    %v66 = vld [vmem:[#allocation2] sm:$0xff]
    %68 = vset.pattern.permute.xlu0 0
    %69 = vperm.xlu0 %68, %v66
    %v70 = vpop.permute.xlu0 %69
    %v73 = vlaneseq
    %v74 = vshrl.u32 %v73, 7
    %v75 = vsub.s32 0, %v74
    %v76 = vrot.slane %v60, %v75
    %v77 = vlaneseq
    %v78 = vshrl.u32 %v77, 7
    %v79 = vsub.s32 1, %v78
    %v80 = vrot.slane %v60, %v79
    %v83 = vmul.f32 %v70, %v76
    %v84 = vmul.f32 %v70, %v80
    %v86 = vlaneseq
    %v87 = vshrl.u32 %v86, 7
    %v88 = vsub.s32 0, %v87
    %v89 = vrot.slane %v62, %v88
    %v90 = vlaneseq
    %v91 = vshrl.u32 %v90, 7
    %v92 = vsub.s32 1, %v91
    %v93 = vrot.slane %v62, %v92
    %v96 = vadd.f32 %v83, %v89
    %v97 = vadd.f32 %v84, %v93
    %v106 = vunpack.c.l.b16 %v52
    %v107 = vunpack.c.h.b16 %v52
    %v108 = vunpack.c.l.b16 %v53
    %v109 = vunpack.c.h.b16 %v53
    %v110 = vunpack.c.l.b16 %v54
    %v111 = vunpack.c.h.b16 %v54
    %v112 = vunpack.c.l.b16 %v55
    %v113 = vunpack.c.h.b16 %v55
    %v114 = vunpack.c.l.b16 %v56
    %v115 = vunpack.c.h.b16 %v56
    %v116 = vunpack.c.l.b16 %v57
    %v117 = vunpack.c.h.b16 %v57
    %v118 = vunpack.c.l.b16 %v58
    %v119 = vunpack.c.h.b16 %v58
    %v120 = vunpack.c.l.b16 %v59
    %v121 = vunpack.c.h.b16 %v59
    %v122 = vpack.c.b16 %v108, %v106
    %v123 = vpack.c.b16 %v109, %v107
    %v124 = vpack.c.b16 %v112, %v110
    %v125 = vpack.c.b16 %v113, %v111
    %v126 = vpack.c.b16 %v116, %v114
    %v127 = vpack.c.b16 %v117, %v115
    %v128 = vpack.c.b16 %v120, %v118
    %v129 = vpack.c.b16 %v121, %v119
    %vm138 = vcmask 523264
    %v140 = vsel %vm138, 0, 0
    %142 = vmatprep.subr.bf16.mxu0 %v123
    %143 = vmatpush1.bf16.msra.mxu0 %v122
    %144 = vmatprep.subr.bf16.mxu0 %v125
    %145 = vmatpush1.bf16.msra.mxu0 %v124
    %146 = vmatprep.subr.bf16.mxu0 %v127
    %147 = vmatpush1.bf16.msra.mxu0 %v126
    %148 = vmatprep.subr.bf16.mxu0 %v129
    %149 = vmatpush1.bf16.msra.mxu0 %v128
    %150 = vmatprep.subr.bf16.mxu0 0
    %151 = vmatpush1.bf16.msra.mxu0 0
    %152 = vmatprep.subr.bf16.mxu0 0
    %153 = vmatpush1.bf16.msra.mxu0 0
    %154 = vmatprep.subr.bf16.mxu0 0
    %155 = vmatpush1.bf16.msra.mxu0 0
    %156 = vmatprep.subr.bf16.mxu0 0
    %157 = vmatpush1.bf16.msra.mxu0 0
    %158 = vmatprep.subr.bf16.mxu0 0
    %159 = vmatpush1.bf16.msra.mxu0 0
    %160 = vmatprep.subr.bf16.mxu0 0
    %161 = vmatpush1.bf16.msra.mxu0 0
    %162 = vmatprep.subr.bf16.mxu0 0
    %163 = vmatpush1.bf16.msra.mxu0 0
    %164 = vmatprep.subr.bf16.mxu0 0
    %165 = vmatpush1.bf16.msra.mxu0 0
    %166 = vmatprep.subr.bf16.mxu0 0
    %167 = vmatpush1.bf16.msra.mxu0 0
    %168 = vmatprep.subr.bf16.mxu0 0
    %169 = vmatpush1.bf16.msra.mxu0 0
    %170 = vmatprep.subr.bf16.mxu0 0
    %171 = vmatpush1.bf16.msra.mxu0 0
    %172 = vmatprep.subr.bf16.mxu0 0
    %173 = vmatpush1.bf16.msra.mxu0 0
    %174 = vmatprep.mubr.bf16.mxu0 0
    %175 = vmatmul.mubr.bf16.gmra.mrb[0].mxu0 %v140
    %v176 = vpop.f32.mrb[0].mxu0
    %v177 = vadd.f32 0.0, %v176
    %v178 = vpop.f32.mrb[0].mxu0
    %v179 = vadd.f32 0.0, %v178
    %v180 = vpop.f32.mrb[0].mxu0
    %v181 = vpop.f32.mrb[0].mxu0
    %182 = vdwg.mxu0
    %v183 = vadd.f32 %v96, %v177
    %v184 = vxor.u32 %v183, 2147483648
    %v185 = vmul.f32 %v184, 1.442695
    %v186 = vpow.pop %v185
    %v187 = vadd.f32 %v186, 1.0
    %v188 = vrcp.pop %v187
    %v189 = vmul.f32 1.0, %v188
    %v190 = vadd.f32 %v179, %v63
    %v191 = vmul.f32 %v189, %v190
    %v192 = vadd.f32 %v97, %v191
    %v193 = vtanh.pop %v192
    %v194 = vsub.f32 1.0, %v189
    %196 = vrot.lane.b32.xlu0 %v193, 64
    %v197 = vpop.permute.xlu0 %196
    %v199 = vmul.f32 %v194, %v197
    %v200 = vmul.f32 %v189, 0.0
    %v201 = vadd.f32 %v199, %v200
    %202 = vset.pattern.permute.xlu0 1
    %203 = vperm.xlu0 %202, %v66
    %v204 = vpop.permute.xlu0 %203
    %v206 = vmul.f32 %v204, %v76
    %v207 = vmul.f32 %v204, %v80
    %v208 = vadd.f32 %v206, %v89
    %v209 = vadd.f32 %v207, %v93
    %v210 = vpack.c.bf16 %v201, %v201
    %212 = vrot.lane.b32.xlu0 %v210, 64
    %v213 = vpop.permute.xlu0 %212
    %v215 = vsel %vm138, %v213, 0
    %217 = vmatprep.subr.bf16.mxu0 %v123
    %218 = vmatpush1.bf16.msra.mxu0 %v122
    %219 = vmatprep.subr.bf16.mxu0 %v125
    %220 = vmatpush1.bf16.msra.mxu0 %v124
    %221 = vmatprep.subr.bf16.mxu0 %v127
    %222 = vmatpush1.bf16.msra.mxu0 %v126
    %223 = vmatprep.subr.bf16.mxu0 %v129
    %224 = vmatpush1.bf16.msra.mxu0 %v128
    %225 = vmatprep.subr.bf16.mxu0 0
    %226 = vmatpush1.bf16.msra.mxu0 0
    %227 = vmatprep.subr.bf16.mxu0 0
    %228 = vmatpush1.bf16.msra.mxu0 0
    %229 = vmatprep.subr.bf16.mxu0 0
    %230 = vmatpush1.bf16.msra.mxu0 0
    %231 = vmatprep.subr.bf16.mxu0 0
    %232 = vmatpush1.bf16.msra.mxu0 0
    %233 = vmatprep.subr.bf16.mxu0 0
    %234 = vmatpush1.bf16.msra.mxu0 0
    %235 = vmatprep.subr.bf16.mxu0 0
    %236 = vmatpush1.bf16.msra.mxu0 0
    %237 = vmatprep.subr.bf16.mxu0 0
    %238 = vmatpush1.bf16.msra.mxu0 0
    %239 = vmatprep.subr.bf16.mxu0 0
    %240 = vmatpush1.bf16.msra.mxu0 0
    %241 = vmatprep.subr.bf16.mxu0 0
    %242 = vmatpush1.bf16.msra.mxu0 0
    %243 = vmatprep.subr.bf16.mxu0 0
    %244 = vmatpush1.bf16.msra.mxu0 0
    %245 = vmatprep.subr.bf16.mxu0 0
    %246 = vmatpush1.bf16.msra.mxu0 0
    %247 = vmatprep.subr.bf16.mxu0 0
    %248 = vmatpush1.bf16.msra.mxu0 0
    %249 = vmatprep.mubr.bf16.mxu0 0
    %250 = vmatmul.mubr.bf16.gmra.mrb[0].mxu0 %v215
    %v251 = vpop.f32.mrb[0].mxu0
    %v252 = vadd.f32 0.0, %v251
    %v253 = vpop.f32.mrb[0].mxu0
    %v254 = vadd.f32 0.0, %v253
    %v255 = vpop.f32.mrb[0].mxu0
    %v256 = vpop.f32.mrb[0].mxu0
    %257 = vdwg.mxu0
    %v258 = vadd.f32 %v208, %v252
    %v259 = vxor.u32 %v258, 2147483648
    %v260 = vmul.f32 %v259, 1.442695
    %v261 = vpow.pop %v260
    %v262 = vadd.f32 %v261, 1.0
    %v263 = vrcp.pop %v262
    %v264 = vmul.f32 1.0, %v263
    %v265 = vadd.f32 %v254, %v63
    %v266 = vmul.f32 %v264, %v265
    %v267 = vadd.f32 %v209, %v266
    %v268 = vtanh.pop %v267
    %v269 = vsub.f32 1.0, %v264
    %271 = vrot.lane.b32.xlu0 %v268, 64
    %v272 = vpop.permute.xlu0 %271
    %v274 = vmul.f32 %v269, %v272
    %v275 = vmul.f32 %v264, %v201
    %v276 = vadd.f32 %v274, %v275
    %277 = vset.pattern.permute.xlu0 2
    %278 = vperm.xlu0 %277, %v66
    %v279 = vpop.permute.xlu0 %278
    %v281 = vmul.f32 %v279, %v76
    %v282 = vmul.f32 %v279, %v80
    %v283 = vadd.f32 %v281, %v89
    %v284 = vadd.f32 %v282, %v93
    %v285 = vpack.c.bf16 %v276, %v276
    %287 = vrot.lane.b32.xlu0 %v285, 64
    %v288 = vpop.permute.xlu0 %287
    %v290 = vsel %vm138, %v288, 0
    %292 = vmatprep.subr.bf16.mxu0 %v123
    %293 = vmatpush1.bf16.msra.mxu0 %v122
    %294 = vmatprep.subr.bf16.mxu0 %v125
    %295 = vmatpush1.bf16.msra.mxu0 %v124
    %296 = vmatprep.subr.bf16.mxu0 %v127
    %297 = vmatpush1.bf16.msra.mxu0 %v126
    %298 = vmatprep.subr.bf16.mxu0 %v129
    %299 = vmatpush1.bf16.msra.mxu0 %v128
    %300 = vmatprep.subr.bf16.mxu0 0
    %301 = vmatpush1.bf16.msra.mxu0 0
    %302 = vmatprep.subr.bf16.mxu0 0
    %303 = vmatpush1.bf16.msra.mxu0 0
    %304 = vmatprep.subr.bf16.mxu0 0
    %305 = vmatpush1.bf16.msra.mxu0 0
    %306 = vmatprep.subr.bf16.mxu0 0
    %307 = vmatpush1.bf16.msra.mxu0 0
    %308 = vmatprep.subr.bf16.mxu0 0
    %309 = vmatpush1.bf16.msra.mxu0 0
    %310 = vmatprep.subr.bf16.mxu0 0
    %311 = vmatpush1.bf16.msra.mxu0 0
    %312 = vmatprep.subr.bf16.mxu0 0
    %313 = vmatpush1.bf16.msra.mxu0 0
    %314 = vmatprep.subr.bf16.mxu0 0
    %315 = vmatpush1.bf16.msra.mxu0 0
    %316 = vmatprep.subr.bf16.mxu0 0
    %317 = vmatpush1.bf16.msra.mxu0 0
    %318 = vmatprep.subr.bf16.mxu0 0
    %319 = vmatpush1.bf16.msra.mxu0 0
    %320 = vmatprep.subr.bf16.mxu0 0
    %321 = vmatpush1.bf16.msra.mxu0 0
    %322 = vmatprep.subr.bf16.mxu0 0
    %323 = vmatpush1.bf16.msra.mxu0 0
    %324 = vmatprep.mubr.bf16.mxu0 0
    %325 = vmatmul.mubr.bf16.gmra.mrb[0].mxu0 %v290
    %v326 = vpop.f32.mrb[0].mxu0
    %v327 = vadd.f32 0.0, %v326
    %v328 = vpop.f32.mrb[0].mxu0
    %v329 = vadd.f32 0.0, %v328
    %v330 = vpop.f32.mrb[0].mxu0
    %v331 = vpop.f32.mrb[0].mxu0
    %332 = vdwg.mxu0
    %v333 = vadd.f32 %v283, %v327
    %v334 = vxor.u32 %v333, 2147483648
    %v335 = vmul.f32 %v334, 1.442695
    %v336 = vpow.pop %v335
    %v337 = vadd.f32 %v336, 1.0
    %v338 = vrcp.pop %v337
    %v339 = vmul.f32 1.0, %v338
    %v340 = vadd.f32 %v329, %v63
    %v341 = vmul.f32 %v339, %v340
    %v342 = vadd.f32 %v284, %v341
    %v343 = vtanh.pop %v342
    %v344 = vsub.f32 1.0, %v339
    %346 = vrot.lane.b32.xlu0 %v343, 64
    %v347 = vpop.permute.xlu0 %346
    %v349 = vmul.f32 %v344, %v347
    %v350 = vmul.f32 %v339, %v276
    %v351 = vadd.f32 %v349, %v350
    %352 = vset.pattern.permute.xlu0 3
    %353 = vperm.xlu0 %352, %v66
    %v354 = vpop.permute.xlu0 %353
    %v356 = vmul.f32 %v354, %v76
    %v357 = vmul.f32 %v354, %v80
    %v358 = vadd.f32 %v356, %v89
    %v359 = vadd.f32 %v357, %v93
    %v360 = vpack.c.bf16 %v351, %v351
    %362 = vrot.lane.b32.xlu0 %v360, 64
    %v363 = vpop.permute.xlu0 %362
    %v365 = vsel %vm138, %v363, 0
    %367 = vmatprep.subr.bf16.mxu0 %v123
    %368 = vmatpush1.bf16.msra.mxu0 %v122
    %369 = vmatprep.subr.bf16.mxu0 %v125
    %370 = vmatpush1.bf16.msra.mxu0 %v124
    %371 = vmatprep.subr.bf16.mxu0 %v127
    %372 = vmatpush1.bf16.msra.mxu0 %v126
    %373 = vmatprep.subr.bf16.mxu0 %v129
    %374 = vmatpush1.bf16.msra.mxu0 %v128
    %375 = vmatprep.subr.bf16.mxu0 0
    %376 = vmatpush1.bf16.msra.mxu0 0
    %377 = vmatprep.subr.bf16.mxu0 0
    %378 = vmatpush1.bf16.msra.mxu0 0
    %379 = vmatprep.subr.bf16.mxu0 0
    %380 = vmatpush1.bf16.msra.mxu0 0
    %381 = vmatprep.subr.bf16.mxu0 0
    %382 = vmatpush1.bf16.msra.mxu0 0
    %383 = vmatprep.subr.bf16.mxu0 0
    %384 = vmatpush1.bf16.msra.mxu0 0
    %385 = vmatprep.subr.bf16.mxu0 0
    %386 = vmatpush1.bf16.msra.mxu0 0
    %387 = vmatprep.subr.bf16.mxu0 0
    %388 = vmatpush1.bf16.msra.mxu0 0
    %389 = vmatprep.subr.bf16.mxu0 0
    %390 = vmatpush1.bf16.msra.mxu0 0
    %391 = vmatprep.subr.bf16.mxu0 0
    %392 = vmatpush1.bf16.msra.mxu0 0
    %393 = vmatprep.subr.bf16.mxu0 0
    %394 = vmatpush1.bf16.msra.mxu0 0
    %395 = vmatprep.subr.bf16.mxu0 0
    %396 = vmatpush1.bf16.msra.mxu0 0
    %397 = vmatprep.subr.bf16.mxu0 0
    %398 = vmatpush1.bf16.msra.mxu0 0
    %399 = vmatprep.mubr.bf16.mxu0 0
    %400 = vmatmul.mubr.bf16.gmra.mrb[0].mxu0 %v365
    %v401 = vpop.f32.mrb[0].mxu0
    %v402 = vadd.f32 0.0, %v401
    %v403 = vpop.f32.mrb[0].mxu0
    %v404 = vadd.f32 0.0, %v403
    %v405 = vpop.f32.mrb[0].mxu0
    %v406 = vpop.f32.mrb[0].mxu0
    %407 = vdwg.mxu0
    %v408 = vadd.f32 %v358, %v402
    %v409 = vxor.u32 %v408, 2147483648
    %v410 = vmul.f32 %v409, 1.442695
    %v411 = vpow.pop %v410
    %v412 = vadd.f32 %v411, 1.0
    %v413 = vrcp.pop %v412
    %v414 = vmul.f32 1.0, %v413
    %v415 = vadd.f32 %v404, %v63
    %v416 = vmul.f32 %v414, %v415
    %v417 = vadd.f32 %v359, %v416
    %v418 = vtanh.pop %v417
    %v419 = vsub.f32 1.0, %v414
    %421 = vrot.lane.b32.xlu0 %v418, 64
    %v422 = vpop.permute.xlu0 %421
    %v424 = vmul.f32 %v419, %v422
    %v425 = vmul.f32 %v414, %v351
    %v426 = vadd.f32 %v424, %v425
    %427 = vset.pattern.permute.xlu0 4
    %428 = vperm.xlu0 %427, %v66
    %v429 = vpop.permute.xlu0 %428
    %v431 = vmul.f32 %v429, %v76
    %v432 = vmul.f32 %v429, %v80
    %v433 = vadd.f32 %v431, %v89
    %v434 = vadd.f32 %v432, %v93
    %v435 = vpack.c.bf16 %v426, %v426
    %437 = vrot.lane.b32.xlu0 %v435, 64
    %v438 = vpop.permute.xlu0 %437
    %v440 = vsel %vm138, %v438, 0
    %442 = vmatprep.subr.bf16.mxu0 %v123
    %443 = vmatpush1.bf16.msra.mxu0 %v122
    %444 = vmatprep.subr.bf16.mxu0 %v125
    %445 = vmatpush1.bf16.msra.mxu0 %v124
    %446 = vmatprep.subr.bf16.mxu0 %v127
    %447 = vmatpush1.bf16.msra.mxu0 %v126
    %448 = vmatprep.subr.bf16.mxu0 %v129
    %449 = vmatpush1.bf16.msra.mxu0 %v128
    %450 = vmatprep.subr.bf16.mxu0 0
    %451 = vmatpush1.bf16.msra.mxu0 0
    %452 = vmatprep.subr.bf16.mxu0 0
    %453 = vmatpush1.bf16.msra.mxu0 0
    %454 = vmatprep.subr.bf16.mxu0 0
    %455 = vmatpush1.bf16.msra.mxu0 0
    %456 = vmatprep.subr.bf16.mxu0 0
    %457 = vmatpush1.bf16.msra.mxu0 0
    %458 = vmatprep.subr.bf16.mxu0 0
    %459 = vmatpush1.bf16.msra.mxu0 0
    %460 = vmatprep.subr.bf16.mxu0 0
    %461 = vmatpush1.bf16.msra.mxu0 0
    %462 = vmatprep.subr.bf16.mxu0 0
    %463 = vmatpush1.bf16.msra.mxu0 0
    %464 = vmatprep.subr.bf16.mxu0 0
    %465 = vmatpush1.bf16.msra.mxu0 0
    %466 = vmatprep.subr.bf16.mxu0 0
    %467 = vmatpush1.bf16.msra.mxu0 0
    %468 = vmatprep.subr.bf16.mxu0 0
    %469 = vmatpush1.bf16.msra.mxu0 0
    %470 = vmatprep.subr.bf16.mxu0 0
    %471 = vmatpush1.bf16.msra.mxu0 0
    %472 = vmatprep.subr.bf16.mxu0 0
    %473 = vmatpush1.bf16.msra.mxu0 0
    %474 = vmatprep.mubr.bf16.mxu0 0
    %475 = vmatmul.mubr.bf16.gmra.mrb[0].mxu0 %v440
    %v476 = vpop.f32.mrb[0].mxu0
    %v477 = vadd.f32 0.0, %v476
    %v478 = vpop.f32.mrb[0].mxu0
    %v479 = vadd.f32 0.0, %v478
    %v480 = vpop.f32.mrb[0].mxu0
    %v481 = vpop.f32.mrb[0].mxu0
    %482 = vdwg.mxu0
    %v483 = vadd.f32 %v433, %v477
    %v484 = vxor.u32 %v483, 2147483648
    %v485 = vmul.f32 %v484, 1.442695
    %v486 = vpow.pop %v485
    %v487 = vadd.f32 %v486, 1.0
    %v488 = vrcp.pop %v487
    %v489 = vmul.f32 1.0, %v488
    %v490 = vadd.f32 %v479, %v63
    %v491 = vmul.f32 %v489, %v490
    %v492 = vadd.f32 %v434, %v491
    %v493 = vtanh.pop %v492
    %v494 = vsub.f32 1.0, %v489
    %496 = vrot.lane.b32.xlu0 %v493, 64
    %v497 = vpop.permute.xlu0 %496
    %v499 = vmul.f32 %v494, %v497
    %v500 = vmul.f32 %v489, %v426
    %v501 = vadd.f32 %v499, %v500
    %502 = vset.pattern.permute.xlu0 5
    %503 = vperm.xlu0 %502, %v66
    %v504 = vpop.permute.xlu0 %503
    %v506 = vmul.f32 %v504, %v76
    %v507 = vmul.f32 %v504, %v80
    %v508 = vadd.f32 %v506, %v89
    %v509 = vadd.f32 %v507, %v93
    %v510 = vpack.c.bf16 %v501, %v501
    %512 = vrot.lane.b32.xlu0 %v510, 64
    %v513 = vpop.permute.xlu0 %512
    %v515 = vsel %vm138, %v513, 0
    %517 = vmatprep.subr.bf16.mxu0 %v123
    %518 = vmatpush1.bf16.msra.mxu0 %v122
    %519 = vmatprep.subr.bf16.mxu0 %v125
    %520 = vmatpush1.bf16.msra.mxu0 %v124
    %521 = vmatprep.subr.bf16.mxu0 %v127
    %522 = vmatpush1.bf16.msra.mxu0 %v126
    %523 = vmatprep.subr.bf16.mxu0 %v129
    %524 = vmatpush1.bf16.msra.mxu0 %v128
    %525 = vmatprep.subr.bf16.mxu0 0
    %526 = vmatpush1.bf16.msra.mxu0 0
    %527 = vmatprep.subr.bf16.mxu0 0
    %528 = vmatpush1.bf16.msra.mxu0 0
    %529 = vmatprep.subr.bf16.mxu0 0
    %530 = vmatpush1.bf16.msra.mxu0 0
    %531 = vmatprep.subr.bf16.mxu0 0
    %532 = vmatpush1.bf16.msra.mxu0 0
    %533 = vmatprep.subr.bf16.mxu0 0
    %534 = vmatpush1.bf16.msra.mxu0 0
    %535 = vmatprep.subr.bf16.mxu0 0
    %536 = vmatpush1.bf16.msra.mxu0 0
    %537 = vmatprep.subr.bf16.mxu0 0
    %538 = vmatpush1.bf16.msra.mxu0 0
    %539 = vmatprep.subr.bf16.mxu0 0
    %540 = vmatpush1.bf16.msra.mxu0 0
    %541 = vmatprep.subr.bf16.mxu0 0
    %542 = vmatpush1.bf16.msra.mxu0 0
    %543 = vmatprep.subr.bf16.mxu0 0
    %544 = vmatpush1.bf16.msra.mxu0 0
    %545 = vmatprep.subr.bf16.mxu0 0
    %546 = vmatpush1.bf16.msra.mxu0 0
    %547 = vmatprep.subr.bf16.mxu0 0
    %548 = vmatpush1.bf16.msra.mxu0 0
    %549 = vmatprep.mubr.bf16.mxu0 0
    %550 = vmatmul.mubr.bf16.gmra.mrb[0].mxu0 %v515
    %v551 = vpop.f32.mrb[0].mxu0
    %v552 = vadd.f32 0.0, %v551
    %v553 = vpop.f32.mrb[0].mxu0
    %v554 = vadd.f32 0.0, %v553
    %v555 = vpop.f32.mrb[0].mxu0
    %v556 = vpop.f32.mrb[0].mxu0
    %557 = vdwg.mxu0
    %v558 = vadd.f32 %v508, %v552
    %v559 = vxor.u32 %v558, 2147483648
    %v560 = vmul.f32 %v559, 1.442695
    %v561 = vpow.pop %v560
    %v562 = vadd.f32 %v561, 1.0
    %v563 = vrcp.pop %v562
    %v564 = vmul.f32 1.0, %v563
    %v565 = vadd.f32 %v554, %v63
    %v566 = vmul.f32 %v564, %v565
    %v567 = vadd.f32 %v509, %v566
    %v568 = vtanh.pop %v567
    %v569 = vsub.f32 1.0, %v564
    %571 = vrot.lane.b32.xlu0 %v568, 64
    %v572 = vpop.permute.xlu0 %571
    %v574 = vmul.f32 %v569, %v572
    %v575 = vmul.f32 %v564, %v501
    %v576 = vadd.f32 %v574, %v575
    %577 = vset.pattern.permute.xlu0 6
    %578 = vperm.xlu0 %577, %v66
    %v579 = vpop.permute.xlu0 %578
    %v581 = vmul.f32 %v579, %v76
    %v582 = vmul.f32 %v579, %v80
    %v583 = vadd.f32 %v581, %v89
    %v584 = vadd.f32 %v582, %v93
    %v585 = vpack.c.bf16 %v576, %v576
    %587 = vrot.lane.b32.xlu0 %v585, 64
    %v588 = vpop.permute.xlu0 %587
    %v590 = vsel %vm138, %v588, 0
    %592 = vmatprep.subr.bf16.mxu0 %v123
    %593 = vmatpush1.bf16.msra.mxu0 %v122
    %594 = vmatprep.subr.bf16.mxu0 %v125
    %595 = vmatpush1.bf16.msra.mxu0 %v124
    %596 = vmatprep.subr.bf16.mxu0 %v127
    %597 = vmatpush1.bf16.msra.mxu0 %v126
    %598 = vmatprep.subr.bf16.mxu0 %v129
    %599 = vmatpush1.bf16.msra.mxu0 %v128
    %600 = vmatprep.subr.bf16.mxu0 0
    %601 = vmatpush1.bf16.msra.mxu0 0
    %602 = vmatprep.subr.bf16.mxu0 0
    %603 = vmatpush1.bf16.msra.mxu0 0
    %604 = vmatprep.subr.bf16.mxu0 0
    %605 = vmatpush1.bf16.msra.mxu0 0
    %606 = vmatprep.subr.bf16.mxu0 0
    %607 = vmatpush1.bf16.msra.mxu0 0
    %608 = vmatprep.subr.bf16.mxu0 0
    %609 = vmatpush1.bf16.msra.mxu0 0
    %610 = vmatprep.subr.bf16.mxu0 0
    %611 = vmatpush1.bf16.msra.mxu0 0
    %612 = vmatprep.subr.bf16.mxu0 0
    %613 = vmatpush1.bf16.msra.mxu0 0
    %614 = vmatprep.subr.bf16.mxu0 0
    %615 = vmatpush1.bf16.msra.mxu0 0
    %616 = vmatprep.subr.bf16.mxu0 0
    %617 = vmatpush1.bf16.msra.mxu0 0
    %618 = vmatprep.subr.bf16.mxu0 0
    %619 = vmatpush1.bf16.msra.mxu0 0
    %620 = vmatprep.subr.bf16.mxu0 0
    %621 = vmatpush1.bf16.msra.mxu0 0
    %622 = vmatprep.subr.bf16.mxu0 0
    %623 = vmatpush1.bf16.msra.mxu0 0
    %624 = vmatprep.mubr.bf16.mxu0 0
    %625 = vmatmul.mubr.bf16.gmra.mrb[0].mxu0 %v590
    %v626 = vpop.f32.mrb[0].mxu0
    %v627 = vadd.f32 0.0, %v626
    %v628 = vpop.f32.mrb[0].mxu0
    %v629 = vadd.f32 0.0, %v628
    %v630 = vpop.f32.mrb[0].mxu0
    %v631 = vpop.f32.mrb[0].mxu0
    %632 = vdwg.mxu0
    %v633 = vadd.f32 %v583, %v627
    %v634 = vxor.u32 %v633, 2147483648
    %v635 = vmul.f32 %v634, 1.442695
    %v636 = vpow.pop %v635
    %v637 = vadd.f32 %v636, 1.0
    %v638 = vrcp.pop %v637
    %v639 = vmul.f32 1.0, %v638
    %v640 = vadd.f32 %v629, %v63
    %v641 = vmul.f32 %v639, %v640
    %v642 = vadd.f32 %v584, %v641
    %v643 = vtanh.pop %v642
    %v644 = vsub.f32 1.0, %v639
    %646 = vrot.lane.b32.xlu0 %v643, 64
    %v647 = vpop.permute.xlu0 %646
    %v649 = vmul.f32 %v644, %v647
    %v650 = vmul.f32 %v639, %v576
    %v651 = vadd.f32 %v649, %v650
    %652 = vset.pattern.permute.xlu0 7
    %653 = vperm.xlu0 %652, %v66
    %v654 = vpop.permute.xlu0 %653
    %v656 = vmul.f32 %v654, %v76
    %v657 = vmul.f32 %v654, %v80
    %v658 = vadd.f32 %v656, %v89
    %v659 = vadd.f32 %v657, %v93
    %v660 = vpack.c.bf16 %v651, %v651
    %662 = vrot.lane.b32.xlu0 %v660, 64
    %v663 = vpop.permute.xlu0 %662
    %v665 = vsel %vm138, %v663, 0
    %667 = vmatprep.subr.bf16.mxu0 %v123
    %668 = vmatpush1.bf16.msra.mxu0 %v122
    %669 = vmatprep.subr.bf16.mxu0 %v125
    %670 = vmatpush1.bf16.msra.mxu0 %v124
    %671 = vmatprep.subr.bf16.mxu0 %v127
    %672 = vmatpush1.bf16.msra.mxu0 %v126
    %673 = vmatprep.subr.bf16.mxu0 %v129
    %674 = vmatpush1.bf16.msra.mxu0 %v128
    %675 = vmatprep.subr.bf16.mxu0 0
    %676 = vmatpush1.bf16.msra.mxu0 0
    %677 = vmatprep.subr.bf16.mxu0 0
    %678 = vmatpush1.bf16.msra.mxu0 0
    %679 = vmatprep.subr.bf16.mxu0 0
    %680 = vmatpush1.bf16.msra.mxu0 0
    %681 = vmatprep.subr.bf16.mxu0 0
    %682 = vmatpush1.bf16.msra.mxu0 0
    %683 = vmatprep.subr.bf16.mxu0 0
    %684 = vmatpush1.bf16.msra.mxu0 0
    %685 = vmatprep.subr.bf16.mxu0 0
    %686 = vmatpush1.bf16.msra.mxu0 0
    %687 = vmatprep.subr.bf16.mxu0 0
    %688 = vmatpush1.bf16.msra.mxu0 0
    %689 = vmatprep.subr.bf16.mxu0 0
    %690 = vmatpush1.bf16.msra.mxu0 0
    %691 = vmatprep.subr.bf16.mxu0 0
    %692 = vmatpush1.bf16.msra.mxu0 0
    %693 = vmatprep.subr.bf16.mxu0 0
    %694 = vmatpush1.bf16.msra.mxu0 0
    %695 = vmatprep.subr.bf16.mxu0 0
    %696 = vmatpush1.bf16.msra.mxu0 0
    %697 = vmatprep.subr.bf16.mxu0 0
    %698 = vmatpush1.bf16.msra.mxu0 0
    %699 = vmatprep.mubr.bf16.mxu0 0
    %700 = vmatmul.mubr.bf16.gmra.mrb[0].mxu0 %v665
    %v701 = vpop.f32.mrb[0].mxu0
    %v702 = vadd.f32 0.0, %v701
    %v703 = vpop.f32.mrb[0].mxu0
    %v704 = vadd.f32 0.0, %v703
    %v705 = vpop.f32.mrb[0].mxu0
    %v706 = vpop.f32.mrb[0].mxu0
    %707 = vdwg.mxu0
    %v708 = vadd.f32 %v658, %v702
    %v709 = vxor.u32 %v708, 2147483648
    %v710 = vmul.f32 %v709, 1.442695
    %v711 = vpow.pop %v710
    %v712 = vadd.f32 %v711, 1.0
    %v713 = vrcp.pop %v712
    %v714 = vmul.f32 1.0, %v713
    %v715 = vadd.f32 %v704, %v63
    %v716 = vmul.f32 %v714, %v715
    %v717 = vadd.f32 %v659, %v716
    %v718 = vtanh.pop %v717
    %v719 = vsub.f32 1.0, %v714
    %721 = vrot.lane.b32.xlu0 %v718, 64
    %v722 = vpop.permute.xlu0 %721
    %v724 = vmul.f32 %v719, %v722
    %v725 = vmul.f32 %v714, %v651
    %v726 = vadd.f32 %v724, %v725
    %728 = vrot.lane.b32.xlu0 %v64, 64
    %v729 = vpop.permute.xlu0 %728
    %v731 = vmul.f32 %v726, %v729
    %733 = vrot.lane.b32.xlu0 %v731, 64
    %v734 = vpop.permute.xlu0 %733
    %v736 = vsel %vm138, %v734, 0.0
    %737 = vadd.xlane.f32.xlu0 %v736
    %v738 = vpop.xlane.xlu0 %737
    %v739 = vadd.f32 %v738, %v65
    %vm740 = vcmask 7168
    %741 = vst.msk [vmem:[%s3] sm:$0xff] %vm740, %v739
    // Predicated region
    $region26: #{tpu_custom_call.1} parent=1 // pred_check
      _
    $region27: #{tpu_custom_call.1} parent=1 // pred_check_branch
      %743 = sbr.rel (0) target = $region29
    $region28: #{tpu_custom_call.1} parent=1 // pred_region
      _
    $region29: #{tpu_custom_call.1} parent=1 // pred_fallthru
      _
    // Predicated region
    $region30: #{tpu_custom_call.1} parent=1 // pred_check
      _
    $region31: #{tpu_custom_call.1} parent=1 // pred_check_branch
      %745 = sbr.rel (0) target = $region33
    $region32: #{tpu_custom_call.1} parent=1 // pred_region
      _
    $region33: #{tpu_custom_call.1} parent=1 // pred_fallthru
      _
    %746 = vsyncpa [#allocation3], 1
    %747 = vsyncpa [#allocation5], 1

</llo_original>
